<compile_context>
chip_gen: v6e
topology: v6e:2x2x1
jax: 0.10.0
libtpu: 0.0.40
codegen_flags: <defaults>
</compile_context>

<pallas_src>
import jax
import jax.numpy as jnp
import numpy as np
from jax.experimental import pallas as pl
from jax.experimental.pallas import tpu as pltpu


# ----------------------------------------------------------------------------
# Primary: zero-traffic aliased identity (no DMA, no grid, no VMEM).
# ----------------------------------------------------------------------------
def _identity_alias_kernel(x_ref, o_ref):
    del x_ref
    # Output buffer *is* the input buffer (input_output_aliases={0: 0});
    # touch keeps a read+write dependency without moving any data.
    pltpu.touch(o_ref)


def _identity_alias(x):
    return pl.pallas_call(
        _identity_alias_kernel,
        out_shape=jax.ShapeDtypeStruct(x.shape, x.dtype),
        in_specs=[pl.BlockSpec(memory_space=pl.ANY)],
        out_specs=pl.BlockSpec(memory_space=pl.ANY),
        input_output_aliases={0: 0},
        cost_estimate=pl.CostEstimate(
            flops=0, transcendentals=0, bytes_accessed=0),
    )(x)


# ----------------------------------------------------------------------------
# Fallback: lane-dense tiled copy (only used if the aliased path cannot lower).
# ----------------------------------------------------------------------------
_BLOCK_BYTES = 2 * 1024 * 1024  # 2 MiB/block -> 8 MiB with 4 buffers (v5e-safe)


def _copy_kernel(x_ref, o_ref):
    # Whole-tile copy: full-width, unmasked vld/vst, no compute.
    o_ref[...] = x_ref[...]


def _identity_copy(x):
    orig_shape = x.shape
    n = int(np.prod(orig_shape)) if orig_shape else 1
    itemsize = x.dtype.itemsize
    # dtype-aware sublane multiple: packed vregs need 16 rows (16-bit) / 32
    # rows (8-bit) per tile, 8 rows for 32-bit.
    sub = {1: 32, 2: 16, 4: 8}.get(itemsize, 8)

    lane_w = None
    for cand in (2048, 1024, 512, 256, 128):  # widest lane-dense slab first
        if n % (cand * sub) == 0:
            lane_w = cand
            break

    if lane_w is None:
        # Irregular size: single full-array block (block == full dims is
        # always a legal BlockSpec) - no jnp.pad / slice extra HBM passes.
        # TODO(synk): tile + masked tail store for very large irregular sizes.
        rows, lane_w = 1, n
        block_rows = 1
        slab = x.reshape(rows, lane_w)
    else:
        rows = n // lane_w
        slab = x.reshape(rows, lane_w)
        # Cap the block at ~2 MiB so double-buffered input + output stays well
        # inside every generation's default scoped-VMEM limit.
        max_rows = max(sub, (_BLOCK_BYTES // (lane_w * itemsize)) // sub * sub)
        block_rows = min(rows, max_rows)
        # If everything fits in one block, split the row axis in two so the
        # "parallel" axis has work for both v7x TensorCores (one extra ~0.35us
        # grid step on single-TC v5e/v6e - negligible).
        if block_rows == rows and rows >= 2 * sub:
            half = pl.cdiv(rows, 2)
            block_rows = ((half + sub - 1) // sub) * sub

    grid = (pl.cdiv(rows, block_rows),)
    out = pl.pallas_call(
        _copy_kernel,
        out_shape=jax.ShapeDtypeStruct((rows, lane_w), slab.dtype),
        grid=grid,
        in_specs=[pl.BlockSpec((block_rows, lane_w), lambda i: (i, 0))],
        out_specs=pl.BlockSpec((block_rows, lane_w), lambda i: (i, 0)),
        compiler_params=pltpu.CompilerParams(
            dimension_semantics=("parallel",)),
        cost_estimate=pl.CostEstimate(
            flops=0, transcendentals=0, bytes_accessed=2 * n * itemsize),
    )(slab)
    return out.reshape(orig_shape)


# ----------------------------------------------------------------------------
# Public wrapper: Pallas equivalent of MyIdentity.forward(x, ref) -> x.
# ----------------------------------------------------------------------------
def my_identity(x, ref=None, *, axis=None, offset=None):
    """`ref`, `axis`, `offset` accepted for parity with the torch module but
    unused, exactly like the original forward."""
    del ref, axis, offset
    try:
        out = _identity_alias(x)
        return jax.block_until_ready(out)  # surface lowering issues here
    except Exception:
        # Extremely defensive: fall back to a VMEM-safe tiled copy.
        return _identity_copy(x)


if __name__ == "__main__":
    # MyIdentity(axis=2, offset=0) applied to a small GSCNN-like feature map.
    N, C, H, W = 2, 4, 16, 16
    key = jax.random.PRNGKey(0)
    k1, k2 = jax.random.split(key)
    x = jax.random.normal(k1, (N, C, H, W), jnp.float32)
    ref = jax.random.normal(k2, (N, 1, 32, 32), jnp.float32)  # unused, as in torch

    # Snapshot the reference values BEFORE the call (the aliased path may
    # donate x's buffer under jit; values are unchanged either way).
    x_np = np.asarray(x)

    out = my_identity(x, ref, axis=2, offset=0)
    out = jax.block_until_ready(out)

    out_np = np.asarray(out)
    np.testing.assert_array_equal(out_np, x_np)
    assert out_np.shape == x_np.shape and out_np.dtype == x_np.dtype
    print("KERNEL_OK")
</pallas_src>

<mosaic_0001>
module attributes {stable_mosaic.version = 11 : i64} {
  func.func @_identity_alias_kernel(%arg0: memref<2x4x16x16xf32, #tpu.memory_space<any>>, %arg1: memref<2x4x16x16xf32, #tpu.memory_space<any>>) attributes {dimension_semantics = [], scalar_prefetch = 0 : i64, scratch_operands = 0 : i64, tpu.core_type = #tpu.core_type<tc>} {
    return
  }
}

module attributes {stable_mosaic.version = 11 : i64} {
  func.func @_copy_kernel(%arg0: i32, %arg1: memref<8x256xf32, #tpu.memory_space<vmem>>, %arg2: memref<8x256xf32, #tpu.memory_space<vmem>>) attributes {dimension_semantics = [#tpu.dimension_semantics<parallel>], iteration_bounds = array<i64: 1>, scalar_prefetch = 0 : i64, scratch_operands = 0 : i64, tpu.core_type = #tpu.core_type<tc>, window_params = [{transform_indices = @transform_0, window_bounds = array<i64: 8, 256>}, {transform_indices = @transform_1, window_bounds = array<i64: 8, 256>}]} {
    %c0 = arith.constant 0 : index
    %c0_0 = arith.constant 0 : index
    %0 = vector.load %arg1[%c0, %c0_0] : memref<8x256xf32, #tpu.memory_space<vmem>>, vector<8x256xf32>
    %c0_1 = arith.constant 0 : index
    %c0_2 = arith.constant 0 : index
    %1 = vector.load %arg2[%c0_1, %c0_2] : memref<8x256xf32, #tpu.memory_space<vmem>>, vector<8x256xf32>
    tpu.vector_store %arg2[%c0_1, %c0_2], %0 {strides = array<i32>} : memref<8x256xf32, #tpu.memory_space<vmem>>, vector<8x256xf32>,
    return
  }
  func.func @transform_0(%arg0: i32) -> (i32, i32) {
    %c0_i32 = arith.constant 0 : i32
    %c0_i32_0 = arith.constant 0 : i32
    return %arg0, %c0_i32 : i32, i32
  }
  func.func @transform_1(%arg0: i32) -> (i32, i32) {
    %c0_i32 = arith.constant 0 : i32
    %c0_i32_0 = arith.constant 0 : i32
    return %arg0, %c0_i32 : i32, i32
  }
}

</mosaic_0001>

<llo_original>
// kernel: tpu_custom_call.1
$region0: #{tpu_custom_call.1}
  #allocation0 [shape = 'u32[]', space=smem, size = 0x4, offset = 0x4, fixed_abs, tag = 'smem constant byte address 0x4 - core index']
  #allocation1 [shape = 'u32[144,128]{1,0:T(1,128)}', space=vmem, size = 0x12000, scoped, tag = 'internal scratch']
  %s0 = inlined_call_operand.hbm [shape: f32[2,4,16,16], index: 0, kind: input, shape index: {}, may-alias: {0,1}]
  %s1 = inlined_call_operand.hbm [shape: f32[2,4,16,16], index: 1, kind: output, shape index: {}, may-alias: {0,1}]
  %s2 = sld [smem:[#allocation0]]
  $region2: #{tpu_custom_call.1} parent=0
    _
  %s4 = ssub.s32 1, %s2
  %s5 = scalar_select 0, %s4, %s2

// kernel: tpu_custom_call.1
$region0: #{tpu_custom_call.1}
  #allocation0 [shape = 'u32[]', space=smem, size = 0x4, offset = 0x4, fixed_abs, tag = 'smem constant byte address 0x4 - core index']
  #allocation1 [shape = 'u32[144,128]{1,0:T(1,128)}', space=vmem, size = 0x12000, scoped, tag = 'internal scratch']
  %s0 = inlined_call_operand.hbm [shape: f32[8,256], index: 0, kind: input, shape index: {}]
  %s1 = inlined_call_operand.hbm [shape: f32[8,256], index: 1, kind: output, shape index: {}]
  %s2 = sld [smem:[#allocation0]]
  $region18: #{tpu_custom_call.1} parent=0
    _
  %s4 = ssub.s32 1, %s2
  %s5 = scalar_select 0, %s4, %s2
  $region1: #{tpu_custom_call.1} parent=0
    #allocation2 [shape = 'u8[8192]{0}', space=vmem, size = 0x2000, scoped, tag = 'input window, operand 0, single buffered']
    #allocation3 [shape = 's32[1]{0}', space=sflag, size = 0x4, scoped, tag = 'scoped memory for tpu_custom_call.1']
    #allocation4 [shape = 's32[1]{0}', space=sflag, size = 0x4, scoped, tag = 'scoped memory for tpu_custom_call.1']
    #allocation5 [shape = 'u8[8192]{0}', space=vmem, size = 0x2000, scoped, tag = 'output window, operand 0, single buffered']
    %6 = vsyncpa [#allocation3], 0
    %7 = vsyncpa [#allocation4], 0
    // Predicated region
    $region2: #{tpu_custom_call.1} parent=1 // pred_check
      _
    $region3: #{tpu_custom_call.1} parent=1 // pred_check_branch
      %9 = sbr.rel (0) target = $region5
    $region4: #{tpu_custom_call.1} parent=1 // pred_region
      %s11 = ssub.s32 256, 256
      %12 = vsyncadd [#allocation3], %s11
      %s14 = sshll.u32 [#allocation2], 4
      %s15 = int_to_ptr.vmem [resolvable:$true] %s14
      %17 = dma.hbm_to_vmem [thread:$0]  %s0, 256, %s15, [#allocation3]
    $region5: #{tpu_custom_call.1} parent=1 // pred_fallthru
      _
    // Predicated region
    $region6: #{tpu_custom_call.1} parent=1 // pred_check
      _
    $region7: #{tpu_custom_call.1} parent=1 // pred_check_branch
      %19 = sbr.rel (0) target = $region9
    $region8: #{tpu_custom_call.1} parent=1 // pred_region
      %20 = dma.done [#allocation3], 256
    $region9: #{tpu_custom_call.1} parent=1 // pred_fallthru
      _
    %v21 = vld [vmem:[#allocation2] sm:$0xff]
    %v22 = vld [vmem:[#allocation2 + $0x8] sm:$0xff]
    %23 = vst [vmem:[#allocation5] sm:$0xff] %v21
    %24 = vst [vmem:[#allocation5 + $0x8] sm:$0xff] %v22
    // Predicated region
    $region10: #{tpu_custom_call.1} parent=1 // pred_check
      _
    $region11: #{tpu_custom_call.1} parent=1 // pred_check_branch
      %26 = sbr.rel (0) target = $region13
    $region12: #{tpu_custom_call.1} parent=1 // pred_region
      %s28 = ssub.s32 256, 256
      %29 = vsyncadd [#allocation4], %s28
      %s31 = sshll.u32 [#allocation5], 4
      %s32 = int_to_ptr.vmem [resolvable:$true] %s31
      %34 = dma.vmem_to_hbm [thread:$0]  %s32, 256, %s1, [#allocation4]
    $region13: #{tpu_custom_call.1} parent=1 // pred_fallthru
      _
    // Predicated region
    $region14: #{tpu_custom_call.1} parent=1 // pred_check
      _
    $region15: #{tpu_custom_call.1} parent=1 // pred_check_branch
      %36 = sbr.rel (0) target = $region17
    $region16: #{tpu_custom_call.1} parent=1 // pred_region
      %37 = dma.done [#allocation4], 256
    $region17: #{tpu_custom_call.1} parent=1 // pred_fallthru
      _
    %38 = vsyncpa [#allocation3], 1
    %39 = vsyncpa [#allocation4], 1

</llo_original>
